<compile_context>
chip_gen: v5e
topology: v5e:2x2
jax: 0.10.0
libtpu: 0.0.40
codegen_flags: <defaults>
</compile_context>

<pallas_src>
import jax
import jax.numpy as jnp
from jax.experimental import pallas as pl
from jax.experimental.pallas import tpu as pltpu

_MIB = 1024 * 1024


def _make_kernel(epi_dtype):
    """Fused MLP-head kernel; epi_dtype = dtype of the bias+ReLU epilogues."""

    def kernel(x_ref,               # (TB, dim)  bf16
               w1_ref, b1_ref,      # (dim,256) bf16, (1,256) epi_dtype
               w2_ref, b2_ref,      # (256,128) bf16 (BN folded), (1,128) epi_dtype (BN folded)
               w3_ref, b3_ref,      # (128,32)  bf16, (1,32) epi_dtype
               w4_ref, b4_ref,      # (1,32)    epi_dtype, (1,1) f32
               out_ref):            # (1, 1, TB) f32 lane-dense row
        # Linear(dim, 256) + ReLU   (bf16 x bf16 -> f32 MXU accumulation)
        h = jnp.dot(x_ref[...], w1_ref[...], preferred_element_type=jnp.float32)
        h = jnp.maximum(h.astype(epi_dtype) + b1_ref[...], 0).astype(jnp.bfloat16)

        # BatchNorm1d(256) eval-mode is folded into W2/b2 in the wrapper.
        # Dropout(): identity in eval mode.
        # TODO(synk): training-mode dropout / batch-stat BN intentionally not implemented.

        # Linear(256, 128) + ReLU
        h = jnp.dot(h, w2_ref[...], preferred_element_type=jnp.float32)
        h = jnp.maximum(h.astype(epi_dtype) + b2_ref[...], 0).astype(jnp.bfloat16)

        # Linear(128, 32) + ReLU
        h = jnp.dot(h, w3_ref[...], preferred_element_type=jnp.float32)
        h = jnp.maximum(h.astype(epi_dtype) + b3_ref[...], 0)

        # Linear(32, 1): tiny N -> VPU multiply (epilogue dtype) + f32 lane reduction
        # (keeps the MXU slot free; shares the dtype already paid for in layer 3).
        p = (h * w4_ref[...]).astype(jnp.float32)
        y = jnp.sum(p, axis=-1, keepdims=True) + b4_ref[...]          # (TB, 1) f32

        # Lane-dense store: transpose the column to a row (XLU) so the output is
        # written with full `vst` instead of one masked store per 8 rows.
        out_ref[...] = jnp.transpose(y).reshape(1, 1, -1)             # (1, 1, TB)

    return kernel


def _round_up(n, m):
    return ((n + m - 1) // m) * m


def _choose_grid(B):
    """Pick (TB rows per grid step, num_tiles)."""
    if B <= 512:
        return _round_up(B, 8), 1            # single tile; pipelining irrelevant here
    num_tiles = max(4, pl.cdiv(B, 1024))     # >=4 tiles: DMA/compute overlap
    num_tiles += num_tiles % 2               # even count -> clean v7x 2-TC split
    TB = _round_up(pl.cdiv(B, num_tiles), 128)
    return TB, num_tiles


def _vmem_estimate_bytes(TB, dim):
    x_stream = 2 * TB * dim * 2                          # bf16 x tile, double-buffered
    out_stream = 2 * TB * 4                              # f32 output row, double-buffered
    w1_res = 2 * dim * 256 * 2                           # resident dim x 256 bf16 (2 bufs)
    small_res = 2 * ((256 * 128 + 128 * 32) * 2 + (256 + 128 + 32 + 32 + 1) * 4)
    live_h = 2 * TB * 256 * 4                            # f32 intermediates / headroom
    return x_stream + out_stream + w1_res + small_res + live_h


def classifier_head(x, params):
    (w1, b1, gamma, beta, mean, var, w2, b2, w3, b3, w4, b4) = params
    B, dim = x.shape
    eps = 1e-5

    # ---- generation-dependent knobs ----
    kind = jax.devices()[0].device_kind.lower()
    bf16_epilogue = ("v6" in kind) or ("v7" in kind)     # v5e & older: f32-only VPU
    epi_dtype = jnp.bfloat16 if bf16_epilogue else jnp.float32
    physical_vmem = (64 if "v7" in kind else 128) * _MIB  # per-TensorCore VMEM
    vmem_cap = (physical_vmem * 3) // 4

    # ---- Fold BatchNorm (eval, running stats) into the second Linear (f32) ----
    s = gamma * jax.lax.rsqrt(var + eps)                 # (1, 256)
    t = beta - mean * s                                  # (1, 256)
    w2_fold = s.reshape(-1, 1) * w2                      # (256, 128)
    b2_fold = t @ w2 + b2                                # (1, 128)

    # ---- MXU operands in bf16; epilogue params in epi_dtype ----
    x_bf = x.astype(jnp.bfloat16)
    w1_bf = w1.astype(jnp.bfloat16)
    w2_bf = w2_fold.astype(jnp.bfloat16)
    w3_bf = w3.astype(jnp.bfloat16)
    b1_e = b1.astype(epi_dtype)
    b2_e = b2_fold.astype(epi_dtype)
    b3_e = b3.astype(epi_dtype)
    w4_row = w4.reshape(1, -1).astype(epi_dtype)         # (1, 32)
    b4_f = b4.reshape(1, 1).astype(jnp.float32)          # (1, 1)

    # ---- Batch tiling + generation-aware VMEM budget ----
    TB, num_tiles = _choose_grid(B)
    while _vmem_estimate_bytes(TB, dim) > vmem_cap and TB > 256:
        TB = max(256, _round_up(TB // 2, 128))
        num_tiles = pl.cdiv(B, TB)
        if num_tiles > 1:
            num_tiles += num_tiles % 2
    vmem_limit = int(min(vmem_cap, max(32 * _MIB, _vmem_estimate_bytes(TB, dim) + 2 * _MIB)))

    B_pad = TB * num_tiles
    if B_pad != B:
        x_bf = jnp.pad(x_bf, ((0, B_pad - B), (0, 0)))

    def resident(arr):
        # full-shape block, constant index -> DMA'd once, stays VMEM-resident
        return pl.BlockSpec(arr.shape, lambda i: (0, 0))

    out = pl.pallas_call(
        _make_kernel(epi_dtype),
        out_shape=jax.ShapeDtypeStruct((num_tiles, 1, TB), jnp.float32),
        grid=(num_tiles,),
        in_specs=[
            pl.BlockSpec((TB, dim), lambda i: (i, 0)),   # x: streamed over the batch
            resident(w1_bf), resident(b1_e),
            resident(w2_bf), resident(b2_e),
            resident(w3_bf), resident(b3_e),
            resident(w4_row), resident(b4_f),
        ],
        out_specs=pl.BlockSpec((1, 1, TB), lambda i: (i, 0, 0)),  # lane-dense row / tile
        compiler_params=pltpu.CompilerParams(
            dimension_semantics=("parallel",),           # megacore sharding on v7x
            vmem_limit_bytes=vmem_limit,
        ),
    )(x_bf, w1_bf, b1_e, w2_bf, b2_e, w3_bf, b3_e, w4_row, b4_f)

    return out.reshape(B_pad)[:B].reshape(B, 1)


def init_params(key, dim):
    """Deterministic parameter init matching the shapes of the PyTorch module."""
    sizes = [(dim, 256), (256, 128), (128, 32), (32, 1)]
    keys = jax.random.split(key, 2 * len(sizes))
    weights, biases = [], []
    for i, (fan_in, fan_out) in enumerate(sizes):
        bound = 1.0 / jnp.sqrt(float(fan_in))
        w = jax.random.uniform(keys[2 * i], (fan_in, fan_out), jnp.float32, -bound, bound)
        b = jax.random.uniform(keys[2 * i + 1], (1, fan_out), jnp.float32, -bound, bound)
        weights.append(w)
        biases.append(b)

    # BatchNorm1d(256) parameters (PyTorch defaults: gamma=1, beta=0, mean=0, var=1)
    gamma = jnp.ones((1, 256), jnp.float32)
    beta = jnp.zeros((1, 256), jnp.float32)
    running_mean = jnp.zeros((1, 256), jnp.float32)
    running_var = jnp.ones((1, 256), jnp.float32)

    return (
        weights[0], biases[0],
        gamma, beta, running_mean, running_var,
        weights[1], biases[1],
        weights[2], biases[2],
        weights[3], biases[3],
    )


def reference(x, params):
    """Pure f32 reference with the original (unfused) BN-eval semantics."""
    (w1, b1, gamma, beta, mean, var, w2, b2, w3, b3, w4, b4) = params
    h = jnp.maximum(x @ w1 + b1, 0.0)
    h = (h - mean) / jnp.sqrt(var + 1e-5) * gamma + beta
    h = jnp.maximum(h @ w2 + b2, 0.0)
    h = jnp.maximum(h @ w3 + b3, 0.0)
    return h @ w4 + b4


if __name__ == "__main__":
    key = jax.random.PRNGKey(0)
    k_x, k_x2, k_p = jax.random.split(key, 3)

    dim = 32
    params = init_params(k_p, dim)

    # Small batch: single-tile path (lane-dense store, epilogue dtype per generation).
    B = 8
    x = jax.random.normal(k_x, (B, dim), jnp.float32)
    out = jax.block_until_ready(classifier_head(x, params))
    ref = reference(x, params)
    assert out.shape == (B, 1), out.shape
    # bf16 MXU operands (+ bf16 epilogues on v6e/v7x) + BN folding => loosened tolerance.
    assert jnp.allclose(out, ref, atol=3e-2, rtol=3e-2), jnp.max(jnp.abs(out - ref))

    # Larger batch: multi-tile grid path (DMA overlap, even tile count, batch padding).
    B2 = 640
    x2 = jax.random.normal(k_x2, (B2, dim), jnp.float32)
    out2 = jax.block_until_ready(classifier_head(x2, params))
    ref2 = reference(x2, params)
    assert out2.shape == (B2, 1), out2.shape
    assert jnp.allclose(out2, ref2, atol=3e-2, rtol=3e-2), jnp.max(jnp.abs(out2 - ref2))

    print("KERNEL_OK")
</pallas_src>

<mosaic_0001>
module attributes {stable_mosaic.version = 11 : i64} {
  func.func @kernel(%arg0: i32, %arg1: memref<8x32xbf16, #tpu.memory_space<vmem>>, %arg2: memref<32x256xbf16, #tpu.memory_space<vmem>>, %arg3: memref<1x256xf32, #tpu.memory_space<vmem>>, %arg4: memref<256x128xbf16, #tpu.memory_space<vmem>>, %arg5: memref<1x128xf32, #tpu.memory_space<vmem>>, %arg6: memref<128x32xbf16, #tpu.memory_space<vmem>>, %arg7: memref<1x32xf32, #tpu.memory_space<vmem>>, %arg8: memref<1x32xf32, #tpu.memory_space<vmem>>, %arg9: memref<1x1xf32, #tpu.memory_space<vmem>>, %arg10: memref<1x1x8xf32, #tpu.memory_space<vmem>>) attributes {dimension_semantics = [#tpu.dimension_semantics<parallel>], iteration_bounds = array<i64: 1>, scalar_prefetch = 0 : i64, scratch_operands = 0 : i64, tpu.core_type = #tpu.core_type<tc>, window_params = [{transform_indices = @transform_0, window_bounds = array<i64: 8, 32>}, {pipeline_mode = #tpu.pipeline_mode<synchronous>, transform_indices = @transform_1, window_bounds = array<i64: 32, 256>}, {pipeline_mode = #tpu.pipeline_mode<synchronous>, transform_indices = @transform_2, window_bounds = array<i64: 1, 256>}, {pipeline_mode = #tpu.pipeline_mode<synchronous>, transform_indices = @transform_3, window_bounds = array<i64: 256, 128>}, {pipeline_mode = #tpu.pipeline_mode<synchronous>, transform_indices = @transform_4, window_bounds = array<i64: 1, 128>}, {pipeline_mode = #tpu.pipeline_mode<synchronous>, transform_indices = @transform_5, window_bounds = array<i64: 128, 32>}, {pipeline_mode = #tpu.pipeline_mode<synchronous>, transform_indices = @transform_6, window_bounds = array<i64: 1, 32>}, {pipeline_mode = #tpu.pipeline_mode<synchronous>, transform_indices = @transform_7, window_bounds = array<i64: 1, 32>}, {pipeline_mode = #tpu.pipeline_mode<synchronous>, transform_indices = @transform_8, window_bounds = array<i64: 1, 1>}, {transform_indices = @transform_9, window_bounds = array<i64: 1, 1, 8>}]} {
    %c0 = arith.constant 0 : index
    %c0_0 = arith.constant 0 : index
    %0 = vector.load %arg1[%c0, %c0_0] : memref<8x32xbf16, #tpu.memory_space<vmem>>, vector<8x32xbf16>
    %c0_1 = arith.constant 0 : index
    %c0_2 = arith.constant 0 : index
    %1 = vector.load %arg2[%c0_1, %c0_2] : memref<32x256xbf16, #tpu.memory_space<vmem>>, vector<32x256xbf16>
    %cst = arith.constant dense<0.000000e+00> : vector<8x256xf32>
    %2 = tpu.matmul %0, %1, %cst {dimension_numbers = #tpu.dot_dimension_numbers<[1], [0], [0], [1], [0, 0, 1, 1], [], []>} : vector<8x32xbf16>, vector<32x256xbf16>, vector<8x256xf32> -> vector<8x256xf32>
    %c0_3 = arith.constant 0 : index
    %c0_4 = arith.constant 0 : index
    %3 = vector.load %arg3[%c0_3, %c0_4] : memref<1x256xf32, #tpu.memory_space<vmem>>, vector<1x256xf32>
    %4 = vector.broadcast %3 : vector<1x256xf32> to vector<8x256xf32>
    %5 = arith.addf %2, %4 : vector<8x256xf32>
    %cst_5 = arith.constant 0.000000e+00 : f32
    %6 = vector.broadcast %cst_5 : f32 to vector<8x256xf32>
    %7 = arith.maximumf %5, %6 : vector<8x256xf32>
    %8 = arith.truncf %7 : vector<8x256xf32> to vector<8x256xbf16>
    %c0_6 = arith.constant 0 : index
    %c0_7 = arith.constant 0 : index
    %9 = vector.load %arg4[%c0_6, %c0_7] : memref<256x128xbf16, #tpu.memory_space<vmem>>, vector<256x128xbf16>
    %cst_8 = arith.constant dense<0.000000e+00> : vector<8x128xf32>
    %10 = tpu.matmul %8, %9, %cst_8 {dimension_numbers = #tpu.dot_dimension_numbers<[1], [0], [0], [1], [0, 0, 1, 1], [], []>} : vector<8x256xbf16>, vector<256x128xbf16>, vector<8x128xf32> -> vector<8x128xf32>
    %c0_9 = arith.constant 0 : index
    %c0_10 = arith.constant 0 : index
    %11 = vector.load %arg5[%c0_9, %c0_10] : memref<1x128xf32, #tpu.memory_space<vmem>>, vector<1x128xf32>
    %12 = vector.broadcast %11 : vector<1x128xf32> to vector<8x128xf32>
    %13 = arith.addf %10, %12 : vector<8x128xf32>
    %cst_11 = arith.constant 0.000000e+00 : f32
    %14 = vector.broadcast %cst_11 : f32 to vector<8x128xf32>
    %15 = arith.maximumf %13, %14 : vector<8x128xf32>
    %16 = arith.truncf %15 : vector<8x128xf32> to vector<8x128xbf16>
    %c0_12 = arith.constant 0 : index
    %c0_13 = arith.constant 0 : index
    %17 = vector.load %arg6[%c0_12, %c0_13] : memref<128x32xbf16, #tpu.memory_space<vmem>>, vector<128x32xbf16>
    %cst_14 = arith.constant dense<0.000000e+00> : vector<8x32xf32>
    %18 = tpu.matmul %16, %17, %cst_14 {dimension_numbers = #tpu.dot_dimension_numbers<[1], [0], [0], [1], [0, 0, 1, 1], [], []>} : vector<8x128xbf16>, vector<128x32xbf16>, vector<8x32xf32> -> vector<8x32xf32>
    %c0_15 = arith.constant 0 : index
    %c0_16 = arith.constant 0 : index
    %19 = vector.load %arg7[%c0_15, %c0_16] : memref<1x32xf32, #tpu.memory_space<vmem>>, vector<1x32xf32>
    %20 = vector.broadcast %19 : vector<1x32xf32> to vector<8x32xf32>
    %21 = arith.addf %18, %20 : vector<8x32xf32>
    %cst_17 = arith.constant 0.000000e+00 : f32
    %22 = vector.broadcast %cst_17 : f32 to vector<8x32xf32>
    %23 = arith.maximumf %21, %22 : vector<8x32xf32>
    %c0_18 = arith.constant 0 : index
    %c0_19 = arith.constant 0 : index
    %24 = vector.load %arg8[%c0_18, %c0_19] : memref<1x32xf32, #tpu.memory_space<vmem>>, vector<1x32xf32>
    %25 = vector.broadcast %24 : vector<1x32xf32> to vector<8x32xf32>
    %26 = arith.mulf %23, %25 : vector<8x32xf32>
    %cst_20 = arith.constant dense<0.000000e+00> : vector<8xf32>
    %27 = vector.multi_reduction <add>, %26, %cst_20 [1] : vector<8x32xf32> to vector<8xf32>
    %28 = vector.shape_cast %27 : vector<8xf32> to vector<8x1xf32>
    %c0_21 = arith.constant 0 : index
    %c0_22 = arith.constant 0 : index
    %29 = vector.load %arg9[%c0_21, %c0_22] : memref<1x1xf32, #tpu.memory_space<vmem>>, vector<1x1xf32>
    %30 = vector.broadcast %29 : vector<1x1xf32> to vector<8x1xf32>
    %31 = arith.addf %28, %30 : vector<8x1xf32>
    %32 = tpu.transpose %31, [1, 0] : vector<8x1xf32> -> vector<1x8xf32>
    %33 = vector.shape_cast %32 : vector<1x8xf32> to vector<1x1x8xf32>
    %c0_23 = arith.constant 0 : index
    %c0_24 = arith.constant 0 : index
    %c0_25 = arith.constant 0 : index
    %34 = vector.load %arg10[%c0_23, %c0_24, %c0_25] : memref<1x1x8xf32, #tpu.memory_space<vmem>>, vector<1x1x8xf32>
    tpu.vector_store %arg10[%c0_23, %c0_24, %c0_25], %33 {strides = array<i32>} : memref<1x1x8xf32, #tpu.memory_space<vmem>>, vector<1x1x8xf32>,
    return
  }
  func.func @transform_0(%arg0: i32) -> (i32, i32) {
    %c0_i32 = arith.constant 0 : i32
    %c0_i32_0 = arith.constant 0 : i32
    return %arg0, %c0_i32 : i32, i32
  }
  func.func @transform_1(%arg0: i32) -> (i32, i32) {
    %c0_i32 = arith.constant 0 : i32
    %c0_i32_0 = arith.constant 0 : i32
    %c0_i32_1 = arith.constant 0 : i32
    return %c0_i32, %c0_i32_0 : i32, i32
  }
  func.func @transform_2(%arg0: i32) -> (i32, i32) {
    %c0_i32 = arith.constant 0 : i32
    %c0_i32_0 = arith.constant 0 : i32
    %c0_i32_1 = arith.constant 0 : i32
    return %c0_i32, %c0_i32_0 : i32, i32
  }
  func.func @transform_3(%arg0: i32) -> (i32, i32) {
    %c0_i32 = arith.constant 0 : i32
    %c0_i32_0 = arith.constant 0 : i32
    %c0_i32_1 = arith.constant 0 : i32
    return %c0_i32, %c0_i32_0 : i32, i32
  }
  func.func @transform_4(%arg0: i32) -> (i32, i32) {
    %c0_i32 = arith.constant 0 : i32
    %c0_i32_0 = arith.constant 0 : i32
    %c0_i32_1 = arith.constant 0 : i32
    return %c0_i32, %c0_i32_0 : i32, i32
  }
  func.func @transform_5(%arg0: i32) -> (i32, i32) {
    %c0_i32 = arith.constant 0 : i32
    %c0_i32_0 = arith.constant 0 : i32
    %c0_i32_1 = arith.constant 0 : i32
    return %c0_i32, %c0_i32_0 : i32, i32
  }
  func.func @transform_6(%arg0: i32) -> (i32, i32) {
    %c0_i32 = arith.constant 0 : i32
    %c0_i32_0 = arith.constant 0 : i32
    %c0_i32_1 = arith.constant 0 : i32
    return %c0_i32, %c0_i32_0 : i32, i32
  }
  func.func @transform_7(%arg0: i32) -> (i32, i32) {
    %c0_i32 = arith.constant 0 : i32
    %c0_i32_0 = arith.constant 0 : i32
    %c0_i32_1 = arith.constant 0 : i32
    return %c0_i32, %c0_i32_0 : i32, i32
  }
  func.func @transform_8(%arg0: i32) -> (i32, i32) {
    %c0_i32 = arith.constant 0 : i32
    %c0_i32_0 = arith.constant 0 : i32
    %c0_i32_1 = arith.constant 0 : i32
    return %c0_i32, %c0_i32_0 : i32, i32
  }
  func.func @transform_9(%arg0: i32) -> (i32, i32, i32) {
    %c0_i32 = arith.constant 0 : i32
    %c0_i32_0 = arith.constant 0 : i32
    %c0_i32_1 = arith.constant 0 : i32
    return %arg0, %c0_i32, %c0_i32_0 : i32, i32, i32
  }
}

</mosaic_0001>

<llo_original>
// kernel: tpu_custom_call.1
$region0: #{tpu_custom_call.1}
  #allocation0 [shape = 'u32[]', space=smem, size = 0x4, offset = 0x4, fixed_abs, tag = 'smem constant byte address 0x4 - core index']
  #allocation1 [shape = 'u32[72,128]{1,0:T(1,128)}', space=vmem, size = 0x9000, scoped, tag = 'internal scratch']
  #allocation2 [shape = 'f32[1,1]{1,0:T(1,128)S(1)}', space=vmem, size = 0x200, scoped, tag = 'scoped memory for tpu_custom_call.1']
  %s0 = inlined_call_operand.vmem [shape: bf16[8,32], index: 0, kind: input, shape index: {}]
  %s1 = inlined_call_operand.vmem [shape: bf16[32,256], index: 1, kind: input, shape index: {}]
  %s2 = inlined_call_operand.vmem [shape: f32[1,256], index: 2, kind: input, shape index: {}]
  %s3 = inlined_call_operand.hbm [shape: bf16[256,128], index: 3, kind: input, shape index: {}]
  %s4 = inlined_call_operand.vmem [shape: f32[1,128], index: 4, kind: input, shape index: {}]
  %s5 = inlined_call_operand.vmem [shape: bf16[128,32], index: 5, kind: input, shape index: {}]
  %s6 = inlined_call_operand.vmem [shape: f32[1,32], index: 6, kind: input, shape index: {}]
  %s7 = inlined_call_operand.vmem [shape: f32[1,32], index: 7, kind: input, shape index: {}]
  %s8 = inlined_call_operand.<no memory space> [shape: f32[1,1], index: 8, kind: input, shape index: {}]
  %s9 = inlined_call_operand.hbm [shape: f32[1,1,8], index: 9, kind: output, shape index: {}]
  %s10 = sld [smem:[#allocation0]]
  $region50: #{tpu_custom_call.1} parent=0
    _
  %s12 = ssub.s32 1, %s10
  %s13 = scalar_select 0, %s12, %s10
  %v14 = vstv %s8
  %15 = vst [vmem:[#allocation2] sm:$0x1] %v14
  $region1: #{tpu_custom_call.1} parent=0
    #allocation3 [shape = 'u8[65536]{0}', space=vmem, size = 0x10000, scoped, tag = 'input window, operand 3, single buffered']
    #allocation4 [shape = 's32[1]{0}', space=sflag, size = 0x4, scoped, tag = 'scoped memory for tpu_custom_call.1']
    #allocation5 [shape = 's32[1]{0}', space=sflag, size = 0x4, scoped, tag = 'scoped memory for tpu_custom_call.1']
    #allocation6 [shape = 'u8[512]{0}', space=vmem, size = 0x400, scoped, tag = 'output window, operand 0, single buffered']
    %16 = vsyncpa [#allocation4], 0
    %17 = vsyncpa [#allocation5], 0
    // Predicated region
    $region2: #{tpu_custom_call.1} parent=1 // pred_check
      _
    $region3: #{tpu_custom_call.1} parent=1 // pred_check_branch
      %19 = sbr.rel (0) target = $region5
    $region4: #{tpu_custom_call.1} parent=1 // pred_region
      _
    $region5: #{tpu_custom_call.1} parent=1 // pred_fallthru
      _
    // Predicated region
    $region6: #{tpu_custom_call.1} parent=1 // pred_check
      _
    $region7: #{tpu_custom_call.1} parent=1 // pred_check_branch
      %21 = sbr.rel (0) target = $region9
    $region8: #{tpu_custom_call.1} parent=1 // pred_region
      _
    $region9: #{tpu_custom_call.1} parent=1 // pred_fallthru
      _
    // Predicated region
    $region10: #{tpu_custom_call.1} parent=1 // pred_check
      _
    $region11: #{tpu_custom_call.1} parent=1 // pred_check_branch
      %23 = sbr.rel (0) target = $region13
    $region12: #{tpu_custom_call.1} parent=1 // pred_region
      _
    $region13: #{tpu_custom_call.1} parent=1 // pred_fallthru
      _
    // Predicated region
    $region14: #{tpu_custom_call.1} parent=1 // pred_check
      _
    $region15: #{tpu_custom_call.1} parent=1 // pred_check_branch
      %25 = sbr.rel (0) target = $region17
    $region16: #{tpu_custom_call.1} parent=1 // pred_region
      %27 = vsyncadd [#allocation4], 0
      %s28 = sshll.u32 %s3, 4
      %s29 = int_to_ptr.hbm [resolvable:$true] %s28
      %s30 = sshll.u32 [#allocation3], 4
      %s31 = int_to_ptr.vmem [resolvable:$true] %s30
      %36 = dma.hbm_to_vmem [thread:$0]  %s29, 2048, %s31, [#allocation4], 64, 64, 4
    $region17: #{tpu_custom_call.1} parent=1 // pred_fallthru
      _
    // Predicated region
    $region18: #{tpu_custom_call.1} parent=1 // pred_check
      _
    $region19: #{tpu_custom_call.1} parent=1 // pred_check_branch
      %38 = sbr.rel (0) target = $region21
    $region20: #{tpu_custom_call.1} parent=1 // pred_region
      _
    $region21: #{tpu_custom_call.1} parent=1 // pred_fallthru
      _
    // Predicated region
    $region22: #{tpu_custom_call.1} parent=1 // pred_check
      _
    $region23: #{tpu_custom_call.1} parent=1 // pred_check_branch
      %40 = sbr.rel (0) target = $region25
    $region24: #{tpu_custom_call.1} parent=1 // pred_region
      _
    $region25: #{tpu_custom_call.1} parent=1 // pred_fallthru
      _
    // Predicated region
    $region26: #{tpu_custom_call.1} parent=1 // pred_check
      _
    $region27: #{tpu_custom_call.1} parent=1 // pred_check_branch
      %42 = sbr.rel (0) target = $region29
    $region28: #{tpu_custom_call.1} parent=1 // pred_region
      _
    $region29: #{tpu_custom_call.1} parent=1 // pred_fallthru
      _
    // Predicated region
    $region30: #{tpu_custom_call.1} parent=1 // pred_check
      _
    $region31: #{tpu_custom_call.1} parent=1 // pred_check_branch
      %44 = sbr.rel (0) target = $region33
    $region32: #{tpu_custom_call.1} parent=1 // pred_region
      _
    $region33: #{tpu_custom_call.1} parent=1 // pred_fallthru
      _
    // Predicated region
    $region34: #{tpu_custom_call.1} parent=1 // pred_check
      _
    $region35: #{tpu_custom_call.1} parent=1 // pred_check_branch
      %46 = sbr.rel (0) target = $region37
    $region36: #{tpu_custom_call.1} parent=1 // pred_region
      _
    $region37: #{tpu_custom_call.1} parent=1 // pred_fallthru
      _
    // Predicated region
    $region38: #{tpu_custom_call.1} parent=1 // pred_check
      _
    $region39: #{tpu_custom_call.1} parent=1 // pred_check_branch
      %48 = sbr.rel (0) target = $region41
    $region40: #{tpu_custom_call.1} parent=1 // pred_region
      %50 = dma.done [#allocation4], 2048
    $region41: #{tpu_custom_call.1} parent=1 // pred_fallthru
      _
    %v52 = vld [vmem:[%s0] sm:$0xf]
    %v53 = vld [vmem:[%s1] sm:$0xff]
    %v54 = vld [vmem:[%s1 + $0x8] sm:$0xff]
    %v55 = vld [vmem:[%s1 + $0x10] sm:$0xff]
    %v56 = vld [vmem:[%s1 + $0x18] sm:$0xff]
    %v57 = vld [vmem:[%s2] sm:$0x3]
    %v59 = vperm.slane %v57, 0
    %v60 = vperm.slane %v57, 1
    %v67 = vunpack.c.l.b16 %v53
    %v68 = vunpack.c.h.b16 %v53
    %v69 = vunpack.c.l.b16 %v54
    %v70 = vunpack.c.h.b16 %v54
    %v71 = vunpack.c.l.b16 %v55
    %v72 = vunpack.c.h.b16 %v55
    %v73 = vunpack.c.l.b16 %v56
    %v74 = vunpack.c.h.b16 %v56
    %v75 = vpack.c.b16 %v69, %v67
    %v76 = vpack.c.b16 %v70, %v68
    %v77 = vpack.c.b16 %v73, %v71
    %v78 = vpack.c.b16 %v74, %v72
    %vm83 = vcmask 261120
    %v85 = vsel %vm83, %v52, 0
    %87 = vmatpush.bf16.msra.mxu0 0
    %88 = vmatpush.bf16.msra.mxu0 0
    %89 = vmatpush.bf16.msra.mxu0 0
    %90 = vmatpush.bf16.msra.mxu0 0
    %91 = vmatpush.bf16.msra.mxu0 0
    %92 = vmatpush.bf16.msra.mxu0 0
    %93 = vmatpush.bf16.msra.mxu0 %v77
    %94 = vmatpush.bf16.msra.mxu0 %v75
    %95 = vmatmul.bf16.gmra.mxu0 %v85
    %v96 = vpop.f32.mrf.mxu0
    %v97 = vadd.f32 %v59, %v96
    %v98 = vpop.f32.mrf.mxu0
    %99 = vdwg.mxu0
    %100 = vmatpush.bf16.msra.mxu0 0
    %101 = vmatpush.bf16.msra.mxu0 0
    %102 = vmatpush.bf16.msra.mxu0 0
    %103 = vmatpush.bf16.msra.mxu0 0
    %104 = vmatpush.bf16.msra.mxu0 0
    %105 = vmatpush.bf16.msra.mxu0 0
    %106 = vmatpush.bf16.msra.mxu0 %v78
    %107 = vmatpush.bf16.msra.mxu0 %v76
    %108 = vmatmul.bf16.gmra.mxu0 %v85
    %v109 = vpop.f32.mrf.mxu0
    %v110 = vadd.f32 %v60, %v109
    %v111 = vpop.f32.mrf.mxu0
    %112 = vdwg.mxu0
    %v113 = vmax.f32 %v97, 0.0
    %v114 = vmax.f32 %v110, 0.0
    %v115 = vpack.c.bf16 %v113, %v113
    %v116 = vpack.c.bf16 %v114, %v114
    %v117 = vld [vmem:[#allocation3] sm:$0xf]
    %v118 = vld [vmem:[#allocation3 + $0x4] sm:$0xf]
    %v119 = vld [vmem:[#allocation3 + $0x8] sm:$0xf]
    %v120 = vld [vmem:[#allocation3 + $0xc] sm:$0xf]
    %v121 = vld [vmem:[#allocation3 + $0x10] sm:$0xf]
    %v122 = vld [vmem:[#allocation3 + $0x14] sm:$0xf]
    %v123 = vld [vmem:[#allocation3 + $0x18] sm:$0xf]
    %v124 = vld [vmem:[#allocation3 + $0x1c] sm:$0xf]
    %v125 = vld [vmem:[#allocation3 + $0x20] sm:$0xf]
    %v126 = vld [vmem:[#allocation3 + $0x24] sm:$0xf]
    %v127 = vld [vmem:[#allocation3 + $0x28] sm:$0xf]
    %v128 = vld [vmem:[#allocation3 + $0x2c] sm:$0xf]
    %v129 = vld [vmem:[#allocation3 + $0x30] sm:$0xf]
    %v130 = vld [vmem:[#allocation3 + $0x34] sm:$0xf]
    %v131 = vld [vmem:[#allocation3 + $0x38] sm:$0xf]
    %v132 = vld [vmem:[#allocation3 + $0x3c] sm:$0xf]
    %v133 = vld [vmem:[#allocation3 + $0x40] sm:$0xf]
    %v134 = vld [vmem:[#allocation3 + $0x44] sm:$0xf]
    %v135 = vld [vmem:[#allocation3 + $0x48] sm:$0xf]
    %v136 = vld [vmem:[#allocation3 + $0x4c] sm:$0xf]
    %v137 = vld [vmem:[#allocation3 + $0x50] sm:$0xf]
    %v138 = vld [vmem:[#allocation3 + $0x54] sm:$0xf]
    %v139 = vld [vmem:[#allocation3 + $0x58] sm:$0xf]
    %v140 = vld [vmem:[#allocation3 + $0x5c] sm:$0xf]
    %v141 = vld [vmem:[#allocation3 + $0x60] sm:$0xf]
    %v142 = vld [vmem:[#allocation3 + $0x64] sm:$0xf]
    %v143 = vld [vmem:[#allocation3 + $0x68] sm:$0xf]
    %v144 = vld [vmem:[#allocation3 + $0x6c] sm:$0xf]
    %v145 = vld [vmem:[#allocation3 + $0x70] sm:$0xf]
    %v146 = vld [vmem:[#allocation3 + $0x74] sm:$0xf]
    %v147 = vld [vmem:[#allocation3 + $0x78] sm:$0xf]
    %v148 = vld [vmem:[#allocation3 + $0x7c] sm:$0xf]
    %v149 = vld [vmem:[%s4] sm:$0x1]
    %v151 = vperm.slane %v149, 0
    %v185 = vunpack.c.l.b16 %v117
    %v186 = vunpack.c.l.b16 %v118
    %v187 = vunpack.c.l.b16 %v119
    %v188 = vunpack.c.l.b16 %v120
    %v189 = vunpack.c.l.b16 %v121
    %v190 = vunpack.c.l.b16 %v122
    %v191 = vunpack.c.l.b16 %v123
    %v192 = vunpack.c.l.b16 %v124
    %v193 = vunpack.c.l.b16 %v125
    %v194 = vunpack.c.l.b16 %v126
    %v195 = vunpack.c.l.b16 %v127
    %v196 = vunpack.c.l.b16 %v128
    %v197 = vunpack.c.l.b16 %v129
    %v198 = vunpack.c.l.b16 %v130
    %v199 = vunpack.c.l.b16 %v131
    %v200 = vunpack.c.l.b16 %v132
    %v201 = vunpack.c.l.b16 %v133
    %v202 = vunpack.c.l.b16 %v134
    %v203 = vunpack.c.l.b16 %v135
    %v204 = vunpack.c.l.b16 %v136
    %v205 = vunpack.c.l.b16 %v137
    %v206 = vunpack.c.l.b16 %v138
    %v207 = vunpack.c.l.b16 %v139
    %v208 = vunpack.c.l.b16 %v140
    %v209 = vunpack.c.l.b16 %v141
    %v210 = vunpack.c.l.b16 %v142
    %v211 = vunpack.c.l.b16 %v143
    %v212 = vunpack.c.l.b16 %v144
    %v213 = vunpack.c.l.b16 %v145
    %v214 = vunpack.c.l.b16 %v146
    %v215 = vunpack.c.l.b16 %v147
    %v216 = vunpack.c.l.b16 %v148
    %v217 = vpack.c.b16 %v186, %v185
    %v218 = vpack.c.b16 %v188, %v187
    %v219 = vpack.c.b16 %v190, %v189
    %v220 = vpack.c.b16 %v192, %v191
    %v221 = vpack.c.b16 %v194, %v193
    %v222 = vpack.c.b16 %v196, %v195
    %v223 = vpack.c.b16 %v198, %v197
    %v224 = vpack.c.b16 %v200, %v199
    %v225 = vpack.c.b16 %v202, %v201
    %v226 = vpack.c.b16 %v204, %v203
    %v227 = vpack.c.b16 %v206, %v205
    %v228 = vpack.c.b16 %v208, %v207
    %v229 = vpack.c.b16 %v210, %v209
    %v230 = vpack.c.b16 %v212, %v211
    %v231 = vpack.c.b16 %v214, %v213
    %v232 = vpack.c.b16 %v216, %v215
    %249 = vmatpush.bf16.msra.mxu0 %v224
    %250 = vmatpush.bf16.msra.mxu0 %v223
    %251 = vmatpush.bf16.msra.mxu0 %v222
    %252 = vmatpush.bf16.msra.mxu0 %v221
    %253 = vmatpush.bf16.msra.mxu0 %v220
    %254 = vmatpush.bf16.msra.mxu0 %v219
    %255 = vmatpush.bf16.msra.mxu0 %v218
    %256 = vmatpush.bf16.msra.mxu0 %v217
    %257 = vmatmul.bf16.gmra.mxu0 %v115
    %v258 = vpop.f32.mrf.mxu0
    %v259 = vadd.f32 %v151, %v258
    %v260 = vpop.f32.mrf.mxu0
    %261 = vdwg.mxu0
    %262 = vmatpush.bf16.msra.mxu0 %v232
    %263 = vmatpush.bf16.msra.mxu0 %v231
    %264 = vmatpush.bf16.msra.mxu0 %v230
    %265 = vmatpush.bf16.msra.mxu0 %v229
    %266 = vmatpush.bf16.msra.mxu0 %v228
    %267 = vmatpush.bf16.msra.mxu0 %v227
    %268 = vmatpush.bf16.msra.mxu0 %v226
    %269 = vmatpush.bf16.msra.mxu0 %v225
    %270 = vmatmul.bf16.gmra.mxu0 %v116
    %v271 = vpop.f32.mrf.mxu0
    %v272 = vadd.f32 %v259, %v271
    %v273 = vpop.f32.mrf.mxu0
    %274 = vdwg.mxu0
    %v275 = vmax.f32 %v272, 0.0
    %v276 = vpack.c.bf16 %v275, %v275
    %v277 = vld [vmem:[%s5] sm:$0xf]
    %v278 = vld [vmem:[%s5 + $0x4] sm:$0xf]
    %v279 = vld [vmem:[%s5 + $0x8] sm:$0xf]
    %v280 = vld [vmem:[%s5 + $0xc] sm:$0xf]
    %v281 = vld [vmem:[%s5 + $0x10] sm:$0xf]
    %v282 = vld [vmem:[%s5 + $0x14] sm:$0xf]
    %v283 = vld [vmem:[%s5 + $0x18] sm:$0xf]
    %v284 = vld [vmem:[%s5 + $0x1c] sm:$0xf]
    %v285 = vld [vmem:[%s5 + $0x20] sm:$0xf]
    %v286 = vld [vmem:[%s5 + $0x24] sm:$0xf]
    %v287 = vld [vmem:[%s5 + $0x28] sm:$0xf]
    %v288 = vld [vmem:[%s5 + $0x2c] sm:$0xf]
    %v289 = vld [vmem:[%s5 + $0x30] sm:$0xf]
    %v290 = vld [vmem:[%s5 + $0x34] sm:$0xf]
    %v291 = vld [vmem:[%s5 + $0x38] sm:$0xf]
    %v292 = vld [vmem:[%s5 + $0x3c] sm:$0xf]
    %v293 = vld [vmem:[%s6] sm:$0x1]
    %v295 = vperm.slane %v293, 0
    %v313 = vunpack.c.l.b16 %v277
    %v314 = vunpack.c.l.b16 %v278
    %v315 = vunpack.c.l.b16 %v279
    %v316 = vunpack.c.l.b16 %v280
    %v317 = vunpack.c.l.b16 %v281
    %v318 = vunpack.c.l.b16 %v282
    %v319 = vunpack.c.l.b16 %v283
    %v320 = vunpack.c.l.b16 %v284
    %v321 = vunpack.c.l.b16 %v285
    %v322 = vunpack.c.l.b16 %v286
    %v323 = vunpack.c.l.b16 %v287
    %v324 = vunpack.c.l.b16 %v288
    %v325 = vunpack.c.l.b16 %v289
    %v326 = vunpack.c.l.b16 %v290
    %v327 = vunpack.c.l.b16 %v291
    %v328 = vunpack.c.l.b16 %v292
    %v329 = vpack.c.b16 %v314, %v313
    %v330 = vpack.c.b16 %v316, %v315
    %v331 = vpack.c.b16 %v318, %v317
    %v332 = vpack.c.b16 %v320, %v319
    %v333 = vpack.c.b16 %v322, %v321
    %v334 = vpack.c.b16 %v324, %v323
    %v335 = vpack.c.b16 %v326, %v325
    %v336 = vpack.c.b16 %v328, %v327
    %345 = vmatpush.bf16.msra.mxu0 %v336
    %346 = vmatpush.bf16.msra.mxu0 %v335
    %347 = vmatpush.bf16.msra.mxu0 %v334
    %348 = vmatpush.bf16.msra.mxu0 %v333
    %349 = vmatpush.bf16.msra.mxu0 %v332
    %350 = vmatpush.bf16.msra.mxu0 %v331
    %351 = vmatpush.bf16.msra.mxu0 %v330
    %352 = vmatpush.bf16.msra.mxu0 %v329
    %353 = vmatmul.bf16.gmra.mxu0 %v276
    %v354 = vpop.f32.mrf.mxu0
    %v355 = vadd.f32 %v295, %v354
    %v356 = vpop.f32.mrf.mxu0
    %357 = vdwg.mxu0
    %v358 = vmax.f32 %v355, 0.0
    %v359 = vld [vmem:[%s7] sm:$0x1]
    %v361 = vperm.slane %v359, 0
    %v363 = vmul.f32 %v358, %v361
    %v364 = vsel %vm83, %v363, 0.0
    %365 = vadd.xlane.f32.xlu0 %v364
    %v366 = vpop.xlane.xlu0 %365
    %v367 = vld [vmem:[#allocation2] sm:$0x1]
    %v369 = vperm.slane %v367, 0
    %v371 = vadd.f32 %v366, %v369
    %372 = vxpose.xlu0.b32.start [1/16] %v371, 128
    %373 = vxpose.xlu0.b32.cont [2/16] 0.0, 128
    %374 = vxpose.xlu0.b32.cont [3/16] 0.0, 128
    %375 = vxpose.xlu0.b32.cont [4/16] 0.0, 128
    %376 = vxpose.xlu0.b32.cont [5/16] 0.0, 128
    %377 = vxpose.xlu0.b32.cont [6/16] 0.0, 128
    %378 = vxpose.xlu0.b32.cont [7/16] 0.0, 128
    %379 = vxpose.xlu0.b32.cont [8/16] 0.0, 128
    %380 = vxpose.xlu0.b32.cont [9/16] 0.0, 128
    %381 = vxpose.xlu0.b32.cont [10/16] 0.0, 128
    %382 = vxpose.xlu0.b32.cont [11/16] 0.0, 128
    %383 = vxpose.xlu0.b32.cont [12/16] 0.0, 128
    %384 = vxpose.xlu0.b32.cont [13/16] 0.0, 128
    %385 = vxpose.xlu0.b32.cont [14/16] 0.0, 128
    %386 = vxpose.xlu0.b32.cont [15/16] 0.0, 128
    %387 = vxpose.xlu0.b32.end [16/16] 0.0, 128
    %v388 = vpop.trf.xlu0
    %v389 = vpop.trf.xlu0
    %v390 = vpop.trf.xlu0
    %v391 = vpop.trf.xlu0
    %v392 = vpop.trf.xlu0
    %v393 = vpop.trf.xlu0
    %v394 = vpop.trf.xlu0
    %v395 = vpop.trf.xlu0
    %v396 = vpop.trf.xlu0
    %v397 = vpop.trf.xlu0
    %v398 = vpop.trf.xlu0
    %v399 = vpop.trf.xlu0
    %v400 = vpop.trf.xlu0
    %v401 = vpop.trf.xlu0
    %v402 = vpop.trf.xlu0
    %v403 = vpop.trf.xlu0
    %vm404 = vcmask 57344
    %405 = vst.msk [vmem:[#allocation6] sm:$0x1] %vm404, %v388
    // Predicated region
    $region42: #{tpu_custom_call.1} parent=1 // pred_check
      _
    $region43: #{tpu_custom_call.1} parent=1 // pred_check_branch
      %407 = sbr.rel (0) target = $region45
    $region44: #{tpu_custom_call.1} parent=1 // pred_region
      %409 = vsyncadd [#allocation5], 0
      %s411 = sshll.u32 [#allocation6], 4
      %s412 = int_to_ptr.vmem [resolvable:$true] %s411
      %s413 = sshll.u32 %s9, 4
      %s414 = int_to_ptr.hbm [resolvable:$true] %s413
      %416 = dma.vmem_to_hbm [thread:$0]  %s412, 16, %s414, [#allocation5]
    $region45: #{tpu_custom_call.1} parent=1 // pred_fallthru
      _
    // Predicated region
    $region46: #{tpu_custom_call.1} parent=1 // pred_check
      _
    $region47: #{tpu_custom_call.1} parent=1 // pred_check_branch
      %418 = sbr.rel (0) target = $region49
    $region48: #{tpu_custom_call.1} parent=1 // pred_region
      %420 = dma.done [#allocation5], 16
    $region49: #{tpu_custom_call.1} parent=1 // pred_fallthru
      _
    %421 = vsyncpa [#allocation4], 1
    %422 = vsyncpa [#allocation5], 1

</llo_original>
